<compile_context>
chip_gen: v7x
topology: tpu7x:2x2x1
jax: 0.10.0
libtpu: 0.0.40
codegen_flags: <defaults>
</compile_context>

<pallas_src>
import functools
import math

import jax
import jax.numpy as jnp
from jax.experimental import pallas as pl
from jax.experimental.pallas import tpu as pltpu

_TARGET_BLOCK_BYTES = 2 * 1024 * 1024   # per-array block budget (fits all gens)
_VMEM_LIMIT_BYTES = 32 * 1024 * 1024    # safe on v5e/v6e (128 MiB) and v7x (64 MiB)
_LANE = 128


def _cdiv(a, b):
    return -(-a // b)


def _nll(loc, scale, tgt, eps):
    scale = jnp.maximum(scale.astype(jnp.float32), eps)
    loc = loc.astype(jnp.float32)
    tgt = tgt.astype(jnp.float32)
    # Exact divide kept for bitwise-close parity with the PyTorch reference
    # (kernel stays memory-bound; EUP is not the binding slot here).
    return jnp.log(2.0 * scale) + jnp.abs(tgt - loc) / scale


def _reduce_kernel(*refs, eps, d, tr, m, n_inner, fused, need_mask):
    """Per-tile NLL, element-wise VMEM accumulation, per-core partial sum."""
    if fused:
        pred_ref, tgt_ref, out_ref, acc_ref = refs
        loc = pred_ref[:, :d]          # lane-aligned static slices (d % 128 == 0)
        scale = pred_ref[:, d:]
    else:
        loc_ref, scale_ref, tgt_ref, out_ref, acc_ref = refs
        loc = loc_ref[...]
        scale = scale_ref[...]

    c = pl.program_id(0)               # core split ('parallel')
    j = pl.program_id(1)               # reduction steps ('arbitrary')

    @pl.when(j == 0)
    def _():
        acc_ref[...] = jnp.zeros_like(acc_ref)

    nll = _nll(loc, scale, tgt_ref[...], eps)
    if need_mask:
        row0 = (c * n_inner + j) * tr
        rows = row0 + jax.lax.broadcasted_iota(jnp.int32, (tr, 1), 0)
        nll = jnp.where(rows < m, nll, 0.0)
    acc_ref[...] += nll                # pure VPU in the steady state

    @pl.when(j == n_inner - 1)
    def _():
        # Single cross-lane reduce per core; broadcast into a lane-dense block.
        out_ref[...] = jnp.full((1, _LANE), jnp.sum(acc_ref[...]), jnp.float32)


def _elementwise_kernel(*refs, eps, d, fused):
    """Per-tile NLL, no reduction ('none')."""
    if fused:
        pred_ref, tgt_ref, out_ref = refs
        loc = pred_ref[:, :d]
        scale = pred_ref[:, d:]
    else:
        loc_ref, scale_ref, tgt_ref, out_ref = refs
        loc = loc_ref[...]
        scale = scale_ref[...]
    out_ref[...] = _nll(loc, scale, tgt_ref[...], eps).astype(out_ref.dtype)


def _choose_tile_rows(m, d, itemsize):
    """Largest row tile (multiple of the packing granule) within the block budget."""
    mult = max(8, 32 // itemsize)               # 8 f32 / 16 bf16 / 32 int8
    per_row = 2 * d * itemsize                  # widest block is the fused pred row
    tr = max(mult, (_TARGET_BLOCK_BYTES // per_row) // mult * mult)
    m_pad = _cdiv(m, mult) * mult
    return min(tr, m_pad)


def laplace_nll_loss(pred, target, eps=1e-6, reduction="mean", tile_rows=None):
    """JAX/Pallas equivalent of LaplaceNLLLoss.forward."""
    *lead, two_d = pred.shape
    d = two_d // 2
    assert two_d == 2 * d, "pred last dim must be even"
    assert target.shape == tuple(lead) + (d,), "target must match pred[..., :D]"

    m = int(math.prod(lead))
    itemsize = jnp.dtype(pred.dtype).itemsize
    tr = int(tile_rows) if tile_rows is not None else _choose_tile_rows(m, d, itemsize)

    fused = (d % _LANE == 0)
    tgt = target.reshape(m, d)                       # collapse leading dims (free)
    if fused:
        ins = (pred.reshape(m, 2 * d), tgt)          # no wrapper-side chunk copy
    else:
        # Lane-unaligned split: keep the wrapper copy (in-kernel slice would
        # materialize a VMEM relayout instead).
        ins = (pred[..., :d].reshape(m, d), pred[..., d:].reshape(m, d), tgt)

    n_blocks = _cdiv(m, tr)
    bytes_in = sum(int(x.size) * x.dtype.itemsize for x in ins)

    if reduction in ("mean", "sum"):
        n_split = 2 if n_blocks > 1 else 1           # use both TCs on v7x
        n_inner = _cdiv(n_blocks, n_split)
        need_mask = (n_split * n_inner * tr) != m

        def in_map(c, j):
            # Clamp so the (rare) overshoot step re-reads the last valid block;
            # its contribution is zeroed by the in-kernel row mask.
            return (jnp.minimum(c * n_inner + j, n_blocks - 1), 0)

        if fused:
            in_specs = [pl.BlockSpec((tr, 2 * d), in_map),
                        pl.BlockSpec((tr, d), in_map)]
        else:
            in_specs = [pl.BlockSpec((tr, d), in_map)] * 3

        kernel = functools.partial(
            _reduce_kernel, eps=float(eps), d=d, tr=tr, m=m,
            n_inner=n_inner, fused=fused, need_mask=need_mask)

        out = pl.pallas_call(
            kernel,
            out_shape=jax.ShapeDtypeStruct((1, _LANE * n_split), jnp.float32),
            grid_spec=pltpu.PrefetchScalarGridSpec(
                num_scalar_prefetch=0,
                grid=(n_split, n_inner),
                in_specs=in_specs,
                out_specs=pl.BlockSpec((1, _LANE), lambda c, j: (0, c)),
                scratch_shapes=[pltpu.VMEM((tr, d), jnp.float32)],
            ),
            compiler_params=pltpu.CompilerParams(
                dimension_semantics=("parallel", "arbitrary"),
                vmem_limit_bytes=_VMEM_LIMIT_BYTES),
            cost_estimate=pl.CostEstimate(
                flops=6 * m * d,
                transcendentals=2 * m * d,
                bytes_accessed=bytes_in + 4 * _LANE * n_split),
        )(*ins)

        total = jnp.sum(out[0, ::_LANE])             # add the per-core partials
        if reduction == "mean":
            total = total / float(m * d)
        return total

    elif reduction == "none":
        def in_map(i):
            return (i, 0)

        if fused:
            in_specs = [pl.BlockSpec((tr, 2 * d), in_map),
                        pl.BlockSpec((tr, d), in_map)]
        else:
            in_specs = [pl.BlockSpec((tr, d), in_map)] * 3

        kernel = functools.partial(_elementwise_kernel, eps=float(eps), d=d,
                                   fused=fused)
        out = pl.pallas_call(
            kernel,
            out_shape=jax.ShapeDtypeStruct((m, d), pred.dtype),
            grid_spec=pltpu.PrefetchScalarGridSpec(
                num_scalar_prefetch=0,
                grid=(n_blocks,),
                in_specs=in_specs,
                out_specs=pl.BlockSpec((tr, d), in_map),
            ),
            compiler_params=pltpu.CompilerParams(
                dimension_semantics=("parallel",),
                vmem_limit_bytes=_VMEM_LIMIT_BYTES),
            cost_estimate=pl.CostEstimate(
                flops=6 * m * d,
                transcendentals=2 * m * d,
                bytes_accessed=bytes_in + m * d * itemsize),
        )(*ins)
        return out.reshape(tuple(lead) + (d,))

    else:
        raise ValueError(f"{reduction} is not a valid value for reduction")


def _reference(pred, target, eps=1e-6, reduction="mean"):
    d = pred.shape[-1] // 2
    loc, scale = pred[..., :d], pred[..., d:]
    scale = jnp.maximum(scale, eps)
    nll = jnp.log(2.0 * scale) + jnp.abs(target - loc) / scale
    if reduction == "mean":
        return nll.mean()
    if reduction == "sum":
        return nll.sum()
    return nll


if __name__ == "__main__":
    key = jax.random.PRNGKey(0)
    k1, k2, k3, k4 = jax.random.split(key, 4)

    # Case 1: lane-aligned D -> fused in-kernel loc/scale split.
    B, N, D = 2, 16, 128
    pred = jax.random.normal(k1, (B, N, 2 * D), dtype=jnp.float32)
    target = jax.random.normal(k2, (B, N, D), dtype=jnp.float32)

    out_mean = jax.block_until_ready(laplace_nll_loss(pred, target, reduction="mean"))
    out_sum = jax.block_until_ready(laplace_nll_loss(pred, target, reduction="sum"))
    out_none = jax.block_until_ready(laplace_nll_loss(pred, target, reduction="none"))

    ref_mean = _reference(pred, target, reduction="mean")
    ref_sum = _reference(pred, target, reduction="sum")
    ref_none = _reference(pred, target, reduction="none")

    assert jnp.allclose(out_mean, ref_mean, rtol=1e-5, atol=1e-5)
    assert jnp.allclose(out_sum, ref_sum, rtol=1e-5, atol=1e-2)
    assert out_none.shape == (B, N, D)
    assert jnp.allclose(out_none, ref_none, rtol=1e-5, atol=1e-5)

    # Case 2: non-lane-aligned D and row count not a multiple of the tile
    # (exercises the wrapper split fallback + masked remainder handling).
    B2, N2, D2 = 3, 7, 64
    pred2 = jax.random.normal(k3, (B2, N2, 2 * D2), dtype=jnp.float32)
    target2 = jax.random.normal(k4, (B2, N2, D2), dtype=jnp.float32)

    out2_mean = jax.block_until_ready(laplace_nll_loss(pred2, target2, reduction="mean"))
    out2_sum = jax.block_until_ready(laplace_nll_loss(pred2, target2, reduction="sum"))
    out2_none = jax.block_until_ready(laplace_nll_loss(pred2, target2, reduction="none"))

    assert jnp.allclose(out2_mean, _reference(pred2, target2, reduction="mean"),
                        rtol=1e-5, atol=1e-5)
    assert jnp.allclose(out2_sum, _reference(pred2, target2, reduction="sum"),
                        rtol=1e-5, atol=1e-2)
    assert jnp.allclose(out2_none, _reference(pred2, target2, reduction="none"),
                        rtol=1e-5, atol=1e-5)

    print("KERNEL_OK")
</pallas_src>

<mosaic_0001>
module attributes {stable_mosaic.version = 11 : i64} {
  func.func @_reduce_kernel(%arg0: i32, %arg1: i32, %arg2: memref<32x256xf32, #tpu.memory_space<vmem>>, %arg3: memref<32x128xf32, #tpu.memory_space<vmem>>, %arg4: memref<1x128xf32, #tpu.memory_space<vmem>>, %arg5: memref<32x128xf32, #tpu.memory_space<vmem>>) attributes {dimension_semantics = [#tpu.dimension_semantics<parallel>, #tpu.dimension_semantics<arbitrary>], iteration_bounds = array<i64: 1, 1>, scalar_prefetch = 0 : i64, scratch_operands = 1 : i64, tpu.core_type = #tpu.core_type<tc>, window_params = [{transform_indices = @transform_0, window_bounds = array<i64: 32, 256>}, {transform_indices = @transform_1, window_bounds = array<i64: 32, 128>}, {transform_indices = @transform_2, window_bounds = array<i64: 1, 128>}]} {
    %c0 = arith.constant 0 : index
    %c0_0 = arith.constant 0 : index
    %0 = vector.load %arg2[%c0, %c0_0] : memref<32x256xf32, #tpu.memory_space<vmem>>, vector<32x128xf32>
    %c0_1 = arith.constant 0 : index
    %c128 = arith.constant 128 : index
    %1 = vector.load %arg2[%c0_1, %c128] : memref<32x256xf32, #tpu.memory_space<vmem>>, vector<32x128xf32>
    %c0_i32 = arith.constant 0 : i32
    %2 = arith.cmpi eq, %arg1, %c0_i32 : i32
    %3 = arith.extui %2 : i1 to i32
    %c0_i32_2 = arith.constant 0 : i32
    %4 = arith.cmpi ne, %3, %c0_i32_2 : i32
    scf.if %4 {
      %cst_12 = arith.constant 0.000000e+00 : f32
      %21 = vector.broadcast %cst_12 : f32 to vector<32x128xf32>
      %c0_13 = arith.constant 0 : index
      %c0_14 = arith.constant 0 : index
      %22 = vector.load %arg5[%c0_13, %c0_14] : memref<32x128xf32, #tpu.memory_space<vmem>>, vector<32x128xf32>
      tpu.vector_store %arg5[%c0_13, %c0_14], %21 {strides = array<i32>} : memref<32x128xf32, #tpu.memory_space<vmem>>, vector<32x128xf32>,
    } else {
    }
    %c0_3 = arith.constant 0 : index
    %c0_4 = arith.constant 0 : index
    %5 = vector.load %arg3[%c0_3, %c0_4] : memref<32x128xf32, #tpu.memory_space<vmem>>, vector<32x128xf32>
    %cst = arith.constant 9.99999997E-7 : f32
    %6 = vector.broadcast %cst : f32 to vector<32x128xf32>
    %7 = arith.maximumf %1, %6 : vector<32x128xf32>
    %cst_5 = arith.constant 2.000000e+00 : f32
    %8 = vector.broadcast %cst_5 : f32 to vector<32x128xf32>
    %9 = arith.mulf %8, %7 : vector<32x128xf32>
    %10 = math.log %9 : vector<32x128xf32>
    %11 = arith.subf %5, %0 : vector<32x128xf32>
    %12 = math.absf %11 : vector<32x128xf32>
    %13 = arith.divf %12, %7 : vector<32x128xf32>
    %14 = arith.addf %10, %13 : vector<32x128xf32>
    %c0_6 = arith.constant 0 : index
    %c0_7 = arith.constant 0 : index
    %15 = vector.load %arg5[%c0_6, %c0_7] : memref<32x128xf32, #tpu.memory_space<vmem>>, vector<32x128xf32>
    %16 = arith.addf %15, %14 : vector<32x128xf32>
    %c0_8 = arith.constant 0 : index
    %c0_9 = arith.constant 0 : index
    %17 = vector.load %arg5[%c0_8, %c0_9] : memref<32x128xf32, #tpu.memory_space<vmem>>, vector<32x128xf32>
    tpu.vector_store %arg5[%c0_8, %c0_9], %16 {strides = array<i32>} : memref<32x128xf32, #tpu.memory_space<vmem>>, vector<32x128xf32>,
    %c0_i32_10 = arith.constant 0 : i32
    %18 = arith.cmpi eq, %arg1, %c0_i32_10 : i32
    %19 = arith.extui %18 : i1 to i32
    %c0_i32_11 = arith.constant 0 : i32
    %20 = arith.cmpi ne, %19, %c0_i32_11 : i32
    scf.if %20 {
      %c0_12 = arith.constant 0 : index
      %c0_13 = arith.constant 0 : index
      %21 = vector.load %arg5[%c0_12, %c0_13] : memref<32x128xf32, #tpu.memory_space<vmem>>, vector<32x128xf32>
      %22 = vector.shape_cast %21 : vector<32x128xf32> to vector<1x32x128xf32>
      %cst_14 = arith.constant dense<0.000000e+00> : vector<1xf32>
      %23 = vector.multi_reduction <add>, %22, %cst_14 [1, 2] : vector<1x32x128xf32> to vector<1xf32>
      %24 = vector.shape_cast %23 : vector<1xf32> to vector<1x1x1xf32>
      %25 = vector.extract %24[0, 0, 0] : f32 from vector<1x1x1xf32>
      %26 = vector.broadcast %25 : f32 to vector<1x128xf32>
      %c0_15 = arith.constant 0 : index
      %c0_16 = arith.constant 0 : index
      %27 = vector.load %arg4[%c0_15, %c0_16] : memref<1x128xf32, #tpu.memory_space<vmem>>, vector<1x128xf32>
      tpu.vector_store %arg4[%c0_15, %c0_16], %26 {strides = array<i32>} : memref<1x128xf32, #tpu.memory_space<vmem>>, vector<1x128xf32>,
    } else {
    }
    return
  }
  func.func @transform_0(%arg0: i32, %arg1: i32) -> (i32, i32) {
    %c1_i32 = arith.constant 1 : i32
    %0 = arith.muli %arg0, %c1_i32 : i32
    %1 = arith.addi %0, %arg1 : i32
    %c0_i32 = arith.constant 0 : i32
    %2 = arith.minsi %1, %c0_i32 : i32
    %c0_i32_0 = arith.constant 0 : i32
    %c0_i32_1 = arith.constant 0 : i32
    return %2, %c0_i32_0 : i32, i32
  }
  func.func @transform_1(%arg0: i32, %arg1: i32) -> (i32, i32) {
    %c1_i32 = arith.constant 1 : i32
    %0 = arith.muli %arg0, %c1_i32 : i32
    %1 = arith.addi %0, %arg1 : i32
    %c0_i32 = arith.constant 0 : i32
    %2 = arith.minsi %1, %c0_i32 : i32
    %c0_i32_0 = arith.constant 0 : i32
    %c0_i32_1 = arith.constant 0 : i32
    return %2, %c0_i32_0 : i32, i32
  }
  func.func @transform_2(%arg0: i32, %arg1: i32) -> (i32, i32) {
    %c0_i32 = arith.constant 0 : i32
    %c0_i32_0 = arith.constant 0 : i32
    return %c0_i32, %arg0 : i32, i32
  }
}

</mosaic_0001>

<llo_original>
// kernel: tpu_custom_call.1
$region0: #{tpu_custom_call.1}
  #allocation0 [shape = 'u32[]', space=smem, size = 0x4, offset = 0x4, fixed_abs, tag = 'smem constant byte address 0x4 - core index']
  #allocation1 [shape = 'u32[144,128]{1,0:T(1,128)}', space=vmem, size = 0x12000, scoped, tag = 'internal scratch']
  #allocation2 [shape = 'f32[32,128]{1,0:T(8,128)}', space=vmem, size = 0x4000, scoped, tag = 'scratch operand']
  %s0 = inlined_call_operand.hbm [shape: f32[32,256], index: 0, kind: input, shape index: {}]
  %s1 = inlined_call_operand.hbm [shape: f32[32,128], index: 1, kind: input, shape index: {}]
  %s2 = inlined_call_operand.hbm [shape: f32[1,128], index: 2, kind: output, shape index: {}]
  %s3 = sld [smem:[#allocation0]]
  $region34: #{tpu_custom_call.1} parent=0
    _
  %s5 = ssub.s32 1, %s3
  %s6 = scalar_select 0, %s5, %s3
  $region1: #{tpu_custom_call.1} parent=0
    #allocation3 [shape = 'u8[32768]{0}', space=vmem, size = 0x8000, scoped, tag = 'input window, operand 0, single buffered']
    #allocation4 [shape = 's32[1]{0}', space=sflag, size = 0x4, scoped, tag = 'scoped memory for tpu_custom_call.1']
    #allocation5 [shape = 's32[1]{0}', space=sflag, size = 0x4, scoped, tag = 'scoped memory for tpu_custom_call.1']
    #allocation6 [shape = 'u8[16384]{0}', space=vmem, size = 0x4000, scoped, tag = 'input window, operand 1, single buffered']
    #allocation7 [shape = 's32[1]{0}', space=sflag, size = 0x4, scoped, tag = 'scoped memory for tpu_custom_call.1']
    #allocation8 [shape = 'u8[512]{0}', space=vmem, size = 0x400, scoped, tag = 'output window, operand 0, single buffered']
    %7 = vsyncpa [#allocation4], 0
    %8 = vsyncpa [#allocation7], 0
    %9 = vsyncpa [#allocation5], 0
    // Predicated region
    $region2: #{tpu_custom_call.1} parent=1 // pred_check
      _
    $region3: #{tpu_custom_call.1} parent=1 // pred_check_branch
      %11 = sbr.rel (0) target = $region5
    $region4: #{tpu_custom_call.1} parent=1 // pred_region
      %s12 = sadd.s32 0, 0
      %p13 = scmp.lt.s32.totalorder %s12, 0
      %s14 = scalar_select %p13, %s12, 0
      %s15 = smul.u32 4, %s14
      %s17 = ssub.s32 1024, 1024
      %18 = vsyncadd [#allocation4], %s17
      %s19 = smul.addr %s15, 2
      %s20 = smul.addr %s19, 128
      %s21 = scalar_lea.hbm %s0, %s20
      %s22 = sshll.u32 [#allocation3], 4
      %s23 = int_to_ptr.vmem [resolvable:$true] %s22
      %28 = dma.hbm_to_vmem [thread:$0]  %s21, 1024, %s23, [#allocation4], 256, 256, 16
    $region5: #{tpu_custom_call.1} parent=1 // pred_fallthru
      _
    // Predicated region
    $region6: #{tpu_custom_call.1} parent=1 // pred_check
      _
    $region7: #{tpu_custom_call.1} parent=1 // pred_check_branch
      %30 = sbr.rel (0) target = $region9
    $region8: #{tpu_custom_call.1} parent=1 // pred_region
      %s31 = sadd.s32 0, 0
      %p32 = scmp.lt.s32.totalorder %s31, 0
      %s33 = scalar_select %p32, %s31, 0
      %s34 = smul.u32 4, %s33
      %s36 = ssub.s32 512, 512
      %37 = vsyncadd [#allocation7], %s36
      %s38 = smul.addr %s34, 128
      %s39 = scalar_lea.hbm %s1, %s38
      %s40 = sshll.u32 [#allocation6], 4
      %s41 = int_to_ptr.vmem [resolvable:$true] %s40
      %46 = dma.hbm_to_vmem [thread:$0]  %s39, 512, %s41, [#allocation7], 128, 128, 8
    $region9: #{tpu_custom_call.1} parent=1 // pred_fallthru
      _
    // Predicated region
    $region10: #{tpu_custom_call.1} parent=1 // pred_check
      _
    $region11: #{tpu_custom_call.1} parent=1 // pred_check_branch
      %48 = sbr.rel (0) target = $region13
    $region12: #{tpu_custom_call.1} parent=1 // pred_region
      %49 = dma.done [#allocation4], 1024
    $region13: #{tpu_custom_call.1} parent=1 // pred_fallthru
      _
    // Predicated region
    $region14: #{tpu_custom_call.1} parent=1 // pred_check
      _
    $region15: #{tpu_custom_call.1} parent=1 // pred_check_branch
      %51 = sbr.rel (0) target = $region17
    $region16: #{tpu_custom_call.1} parent=1 // pred_region
      %52 = dma.done [#allocation7], 512
    $region17: #{tpu_custom_call.1} parent=1 // pred_fallthru
      _
    %s53 = sadd.s32 0, 0
    %p54 = scmp.lt.s32.totalorder %s53, 0
    %s55 = scalar_select %p54, %s53, 0
    %s56 = smul.u32 4, %s55
    %s57 = sadd.s32 0, 0
    %p58 = scmp.lt.s32.totalorder %s57, 0
    %s59 = scalar_select %p58, %s57, 0
    %s60 = smul.u32 4, %s59
    %v61 = vld [vmem:[#allocation3] sm:$0xff]
    %v62 = vld [vmem:[#allocation3 + $0x10] sm:$0xff]
    %v63 = vld [vmem:[#allocation3 + $0x20] sm:$0xff]
    %v64 = vld [vmem:[#allocation3 + $0x30] sm:$0xff]
    %v65 = vld [vmem:[#allocation3 + $0x8] sm:$0xff]
    %v66 = vld [vmem:[#allocation3 + $0x18] sm:$0xff]
    %v67 = vld [vmem:[#allocation3 + $0x28] sm:$0xff]
    %v68 = vld [vmem:[#allocation3 + $0x38] sm:$0xff]
    %p69 = scmp.eq.s32.totalorder 0, 0
    // Predicated region
    $region18: #{tpu_custom_call.1} parent=1 // pred_check
      %p70 = pneg %p69
    $region19: #{tpu_custom_call.1} parent=1 // pred_check_branch
      %72 = sbr.rel (%p70) target = $region21
    $region20: #{tpu_custom_call.1} parent=1 // pred_region
      %73 = vst [vmem:[#allocation2] sm:$0xff] 0.0
      %74 = vst [vmem:[#allocation2 + $0x8] sm:$0xff] 0.0
      %75 = vst [vmem:[#allocation2 + $0x10] sm:$0xff] 0.0
      %76 = vst [vmem:[#allocation2 + $0x18] sm:$0xff] 0.0
    $region21: #{tpu_custom_call.1} parent=1 // pred_fallthru
      _
    %v77 = vld [vmem:[#allocation6] sm:$0xff]
    %v78 = vld [vmem:[#allocation6 + $0x8] sm:$0xff]
    %v79 = vld [vmem:[#allocation6 + $0x10] sm:$0xff]
    %v80 = vld [vmem:[#allocation6 + $0x18] sm:$0xff]
    %v81 = vmax.f32 %v65, 1e-06
    %v82 = vmax.f32 %v66, 1e-06
    %v83 = vmax.f32 %v67, 1e-06
    %v84 = vmax.f32 %v68, 1e-06
    %v85 = vmul.f32 %v81, 2.0
    %v86 = vmul.f32 %v82, 2.0
    %v87 = vmul.f32 %v83, 2.0
    %v88 = vmul.f32 %v84, 2.0
    %v89 = vlog2.pop %v85
    %v90 = vmul.f32 %v89, 0.6931472
    %v91 = vlog2.pop %v86
    %v92 = vmul.f32 %v91, 0.6931472
    %v93 = vlog2.pop %v87
    %v94 = vmul.f32 %v93, 0.6931472
    %v95 = vlog2.pop %v88
    %v96 = vmul.f32 %v95, 0.6931472
    %v97 = vsub.f32 %v77, %v61
    %v98 = vsub.f32 %v78, %v62
    %v99 = vsub.f32 %v79, %v63
    %v100 = vsub.f32 %v80, %v64
    %v101 = vand.u32 2147483647, %v97
    %v102 = vand.u32 2147483647, %v98
    %v103 = vand.u32 2147483647, %v99
    %v104 = vand.u32 2147483647, %v100
    %v105 = vrcp.pop %v81
    %v106 = vmul.f32 %v101, %v105
    %v107 = vrcp.pop %v82
    %v108 = vmul.f32 %v102, %v107
    %v109 = vrcp.pop %v83
    %v110 = vmul.f32 %v103, %v109
    %v111 = vrcp.pop %v84
    %v112 = vmul.f32 %v104, %v111
    %v113 = vadd.f32 %v90, %v106
    %v114 = vadd.f32 %v92, %v108
    %v115 = vadd.f32 %v94, %v110
    %v116 = vadd.f32 %v96, %v112
    %v117 = vld [vmem:[#allocation2] sm:$0xff]
    %v118 = vld [vmem:[#allocation2 + $0x8] sm:$0xff]
    %v119 = vld [vmem:[#allocation2 + $0x10] sm:$0xff]
    %v120 = vld [vmem:[#allocation2 + $0x18] sm:$0xff]
    %v121 = vadd.f32 %v117, %v113
    %v122 = vadd.f32 %v118, %v114
    %v123 = vadd.f32 %v119, %v115
    %v124 = vadd.f32 %v120, %v116
    %125 = vst [vmem:[#allocation2] sm:$0xff] %v121
    %126 = vst [vmem:[#allocation2 + $0x8] sm:$0xff] %v122
    %127 = vst [vmem:[#allocation2 + $0x10] sm:$0xff] %v123
    %128 = vst [vmem:[#allocation2 + $0x18] sm:$0xff] %v124
    // Predicated region
    $region22: #{tpu_custom_call.1} parent=1 // pred_check
      %p129 = pneg %p69
    $region23: #{tpu_custom_call.1} parent=1 // pred_check_branch
      %131 = sbr.rel (%p129) target = $region25
    $region24: #{tpu_custom_call.1} parent=1 // pred_region
      %v132 = vld [vmem:[#allocation2] sm:$0xff]
      %v133 = vld [vmem:[#allocation2 + $0x8] sm:$0xff]
      %v134 = vld [vmem:[#allocation2 + $0x10] sm:$0xff]
      %v135 = vld [vmem:[#allocation2 + $0x18] sm:$0xff]
      %v136 = vadd.f32 %v132, %v133
      %v137 = vadd.f32 %v136, %v134
      %v138 = vadd.f32 %v137, %v135
      %139 = vadd.xlane.f32.xlu0 %v138
      %v140 = vpop.xlane.xlu0 %139
      %v141 = vrot.slane %v140, 4
      %v142 = vadd.f32 %v140, %v141
      %v143 = vrot.slane %v142, 2
      %v144 = vadd.f32 %v142, %v143
      %v145 = vrot.slane %v144, 1
      %v146 = vadd.f32 %v144, %v145
      %s147 = vtos %v146
      %v148 = vstv %s147
      %149 = vst [vmem:[#allocation8] sm:$0x1] %v148
    $region25: #{tpu_custom_call.1} parent=1 // pred_fallthru
      _
    // Predicated region
    $region26: #{tpu_custom_call.1} parent=1 // pred_check
      _
    $region27: #{tpu_custom_call.1} parent=1 // pred_check_branch
      %151 = sbr.rel (0) target = $region29
    $region28: #{tpu_custom_call.1} parent=1 // pred_region
      %s153 = ssub.s32 16, 16
      %154 = vsyncadd [#allocation5], %s153
      %s156 = sshll.u32 [#allocation8], 4
      %s157 = int_to_ptr.vmem [resolvable:$true] %s156
      %159 = dma.vmem_to_hbm [thread:$0]  %s157, 16, %s2, [#allocation5]
    $region29: #{tpu_custom_call.1} parent=1 // pred_fallthru
      _
    // Predicated region
    $region30: #{tpu_custom_call.1} parent=1 // pred_check
      _
    $region31: #{tpu_custom_call.1} parent=1 // pred_check_branch
      %161 = sbr.rel (0) target = $region33
    $region32: #{tpu_custom_call.1} parent=1 // pred_region
      %162 = dma.done [#allocation5], 16
    $region33: #{tpu_custom_call.1} parent=1 // pred_fallthru
      _
    %163 = vsyncpa [#allocation4], 1
    %164 = vsyncpa [#allocation7], 1
    %165 = vsyncpa [#allocation5], 1

</llo_original>
